<compile_context>
chip_gen: v6e
topology: v6e:2x2x1
jax: 0.10.0
libtpu: 0.0.40
codegen_flags: <defaults>
</compile_context>

<pallas_src>
import jax
import jax.numpy as jnp
from jax import lax
from jax.experimental import pallas as pl
from jax.experimental.pallas import tpu as pltpu


def _round_up(x, m):
    return ((x + m - 1) // m) * m


def _vmem_capacity_bytes():
    try:
        info = pltpu.get_tpu_info()
        cap = getattr(info, "vmem_capacity_bytes", None)
        if cap:
            return int(cap)
    except Exception:
        pass
    return 64 * 1024 * 1024  # conservative fallback: v7x per-TensorCore VMEM


def _default_num_parallel():
    # 2 TensorCores per chip on v7x (and megacore v4/v5p); 1 on v5e/v6e.
    try:
        kind = (getattr(jax.devices()[0], "device_kind", "") or "").lower()
        if "7" in kind or "v4" in kind or "v5p" in kind:
            return 2
    except Exception:
        pass
    return 1


def _make_kl_kernel(*, R, C, row_tile, class_tile, T, CT, mask_rows, mask_cols):
    """Builds a kernel specialized for the (static) tiling configuration."""

    def kernel(prob_ref, logits_ref, loss_out_ref, len_out_ref, *scratch):
        if CT > 1:
            m_acc, l_acc, psum_acc, pzm_acc, loss_sum, len_sum = scratch
        else:
            loss_sum, len_sum = scratch

        pi = pl.program_id(0)   # parallel chunk
        t = pl.program_id(1)    # row tile within chunk
        ct = pl.program_id(2)   # class chunk (innermost reduction)

        @pl.when((t == 0) & (ct == 0))
        def _():
            loss_sum[...] = jnp.zeros_like(loss_sum)
            len_sum[...] = jnp.zeros_like(len_sum)

        p = prob_ref[...].astype(jnp.float32)     # (row_tile, class_tile)
        z = logits_ref[...].astype(jnp.float32)   # (row_tile, class_tile)

        if mask_cols:
            col = lax.broadcasted_iota(jnp.int32, z.shape, 1) + ct * class_tile
            in_c = col < C
            z = jnp.where(in_c, z, -1e30)   # exp() underflows to 0; max ignores
            p = jnp.where(in_c, p, 0.0)

        def accumulate_rows(psum, log_l, pzm):
            # per-row: sum_c p*(lse - z) = psum*(lse - m) - sum_c p*(z - m)
            row_loss = psum * log_l - pzm                      # (row_tile, 1)
            row_valid = (psum > 0.001).astype(jnp.float32)     # (row_tile, 1)
            if mask_rows:
                row = (lax.broadcasted_iota(jnp.int32, row_loss.shape, 0)
                       + (pi * T + t) * row_tile)
                in_r = row < R
                row_loss = jnp.where(in_r, row_loss, 0.0)
                row_valid = jnp.where(in_r, row_valid, 0.0)
            # Collapse once per tile (XLU reduce, which has slack) and
            # accumulate into tiny (1,1) scalars instead of RMW'ing
            # lane-sparse (row_tile,1) buffers every grid step.
            loss_sum[...] = loss_sum[...] + jnp.sum(row_loss)
            len_sum[...] = len_sum[...] + jnp.sum(row_valid)

        if CT == 1:
            # Full-C path: no per-row streaming state needed.
            m = jnp.max(z, axis=-1, keepdims=True)
            log_l = jnp.log(jnp.sum(jnp.exp(z - m), axis=-1, keepdims=True))
            psum = jnp.sum(p, axis=-1, keepdims=True)
            pzm = jnp.sum(p * (z - m), axis=-1, keepdims=True)
            accumulate_rows(psum, log_l, pzm)
        else:
            # Streaming (online) LSE over class chunks.
            @pl.when(ct == 0)
            def _():
                m_acc[...] = jnp.full_like(m_acc, -1e30)
                l_acc[...] = jnp.zeros_like(l_acc)
                psum_acc[...] = jnp.zeros_like(psum_acc)
                pzm_acc[...] = jnp.zeros_like(pzm_acc)

            m_old = m_acc[...]
            m_new = jnp.maximum(m_old, jnp.max(z, axis=-1, keepdims=True))
            alpha = jnp.exp(m_old - m_new)
            l_acc[...] = (alpha * l_acc[...]
                          + jnp.sum(jnp.exp(z - m_new), axis=-1, keepdims=True))
            # Running pzm = sum_c p*(z - m_running): rescale to the new m
            # (uses psum_acc BEFORE this chunk's contribution), then add chunk.
            pzm_acc[...] = (pzm_acc[...] - (m_new - m_old) * psum_acc[...]
                            + jnp.sum(p * (z - m_new), axis=-1, keepdims=True))
            psum_acc[...] = psum_acc[...] + jnp.sum(p, axis=-1, keepdims=True)
            m_acc[...] = m_new

            @pl.when(ct == CT - 1)
            def _():
                accumulate_rows(psum_acc[...], jnp.log(l_acc[...]), pzm_acc[...])

        @pl.when((t == T - 1) & (ct == CT - 1))
        def _():
            # One lane-dense (8,128) unmasked store per chunk.
            loss_out_ref[...] = jnp.broadcast_to(loss_sum[...], (1, 8, 128))
            len_out_ref[...] = jnp.broadcast_to(len_sum[...], (1, 8, 128))

    return kernel


def kl_divergence(prob, logits, *, row_tile=None, class_tile=None,
                  num_parallel=None, vmem_limit_bytes=None):
    assert prob.shape == logits.shape
    C = prob.shape[-1]
    prob2 = prob.reshape(-1, C)
    logits2 = logits.reshape(-1, C)
    R = prob2.shape[0]

    # ---- generation-aware VMEM sizing -------------------------------------
    capacity = _vmem_capacity_bytes()
    if vmem_limit_bytes is None:
        vmem_limit_bytes = int(0.70 * capacity)
    budget = int(0.30 * capacity)

    p_item = jnp.dtype(prob2.dtype).itemsize
    z_item = jnp.dtype(logits2.dtype).itemsize
    # 2 pipeline buffers per input + ~4 live f32 temporaries per element.
    bytes_per_elem = 2 * (p_item + z_item) + 4 * 4

    if num_parallel is None:
        num_parallel = _default_num_parallel()
    P = max(1, min(int(num_parallel), pl.cdiv(R, 8)))

    # ---- class tiling: stream C only when full-C would crush the row tile --
    if class_tile is None:
        rows_full_c = max(8, (budget // (C * bytes_per_elem)) // 8 * 8)
        if rows_full_c >= min(512, _round_up(R, 8)):
            class_tile = C
        else:
            ct_target = budget // (512 * bytes_per_elem)
            ct_target = max(128, (ct_target // 128) * 128)
            class_tile = min(ct_target, (C // 128) * 128)
    class_tile = min(int(class_tile), C)
    CT = pl.cdiv(C, class_tile)
    mask_cols = (C % class_tile) != 0

    # ---- row tiling: biggest tile that fits, shrunk to barely cover R ------
    if row_tile is None:
        cap = max(8, (budget // (class_tile * bytes_per_elem)) // 8 * 8)
        cap = min(cap, 4096)
    else:
        cap = max(8, _round_up(int(row_tile), 8))
    rows_per_chunk = pl.cdiv(R, P)
    T = pl.cdiv(rows_per_chunk, cap)
    row_tile = min(cap, _round_up(pl.cdiv(rows_per_chunk, T), 8))
    covered = P * T * row_tile            # >= R; overshoot <= ~one (masked) tile
    mask_rows = covered != R

    # Clamp fully-out-of-range row blocks back onto valid data (their rows are
    # then zeroed by the in-kernel mask). Only needed in degenerate configs.
    last_row_block = max(0, pl.cdiv(R, row_tile) - 1)
    need_clamp = (P * T - 1) > last_row_block
    if need_clamp:
        def in_map(pi, t, ct):
            return (jnp.minimum(pi * T + t, last_row_block), ct)
    else:
        def in_map(pi, t, ct):
            return (pi * T + t, ct)

    def out_map(pi, t, ct):
        return (pi, 0, 0)

    kernel = _make_kl_kernel(R=R, C=C, row_tile=row_tile, class_tile=class_tile,
                             T=T, CT=CT, mask_rows=mask_rows, mask_cols=mask_cols)

    scratch = [pltpu.VMEM((1, 1), jnp.float32),    # per-chunk running loss sum
               pltpu.VMEM((1, 1), jnp.float32)]    # per-chunk running valid count
    if CT > 1:
        scratch = [pltpu.VMEM((row_tile, 1), jnp.float32),   # running max m
                   pltpu.VMEM((row_tile, 1), jnp.float32),   # running sum exp(z-m)
                   pltpu.VMEM((row_tile, 1), jnp.float32),   # running sum p
                   pltpu.VMEM((row_tile, 1), jnp.float32),   # running sum p*(z-m)
                   ] + scratch

    loss_out, len_out = pl.pallas_call(
        kernel,
        out_shape=(
            jax.ShapeDtypeStruct((P, 8, 128), jnp.float32),
            jax.ShapeDtypeStruct((P, 8, 128), jnp.float32),
        ),
        grid_spec=pltpu.PrefetchScalarGridSpec(
            num_scalar_prefetch=0,
            grid=(P, T, CT),
            in_specs=[
                pl.BlockSpec((row_tile, class_tile), in_map),
                pl.BlockSpec((row_tile, class_tile), in_map),
            ],
            out_specs=[
                pl.BlockSpec((1, 8, 128), out_map),
                pl.BlockSpec((1, 8, 128), out_map),
            ],
            scratch_shapes=scratch,
        ),
        compiler_params=pltpu.CompilerParams(
            dimension_semantics=("parallel", "arbitrary", "arbitrary"),
            vmem_limit_bytes=int(vmem_limit_bytes),
        ),
    )(prob2, logits2)

    loss = jnp.sum(loss_out[:, 0, 0])
    length = jnp.sum(len_out[:, 0, 0])
    return loss / length


def _reference(prob, logits):
    length = jnp.sum((jnp.sum(prob, -1) > 0.001).astype(jnp.float32))
    log_sm = jax.nn.log_softmax(logits, axis=-1)
    loss = jnp.sum(-prob * log_sm)
    return loss / length


if __name__ == "__main__":
    key = jax.random.PRNGKey(0)
    k1, k2, k3, k4 = jax.random.split(key, 4)

    # ---- test 1: module-scale shapes (B=2, S=8, C=32), default tiling -----
    B, S, C = 2, 8, 32
    raw = jax.random.uniform(k1, (B, S, C), dtype=jnp.float32)
    prob = raw / jnp.sum(raw, -1, keepdims=True)
    mask = (jnp.ones((B, S, 1), dtype=jnp.float32)
            .at[0, 0, 0].set(0.0)
            .at[1, 3, 0].set(0.0))
    prob = prob * mask
    logits = jax.random.normal(k2, (B, S, C), dtype=jnp.float32)

    out = kl_divergence(prob, logits)
    out = jax.block_until_ready(out)
    ref = _reference(prob, logits)
    assert jnp.allclose(out, ref, rtol=1e-4, atol=1e-4), (out, ref)

    # ---- test 2: exercise the streaming-LSE / masked-tail paths -----------
    R2, C2 = 20, 200   # R not multiple of 8, C not multiple of 128
    raw2 = jax.random.uniform(k3, (R2, C2), dtype=jnp.float32)
    prob2 = raw2 / jnp.sum(raw2, -1, keepdims=True)
    prob2 = prob2 * (jnp.ones((R2, 1), dtype=jnp.float32).at[5, 0].set(0.0))
    logits2 = jax.random.normal(k4, (R2, C2), dtype=jnp.float32)

    out2 = kl_divergence(prob2, logits2, row_tile=8, class_tile=128,
                         num_parallel=1)
    out2 = jax.block_until_ready(out2)
    ref2 = _reference(prob2, logits2)
    assert jnp.allclose(out2, ref2, rtol=1e-4, atol=1e-4), (out2, ref2)

    print("KERNEL_OK")
</pallas_src>

<mosaic_0001>
module attributes {stable_mosaic.version = 11 : i64} {
  func.func @kernel(%arg0: i32, %arg1: i32, %arg2: i32, %arg3: memref<16x32xf32, #tpu.memory_space<vmem>>, %arg4: memref<16x32xf32, #tpu.memory_space<vmem>>, %arg5: memref<1x8x128xf32, #tpu.memory_space<vmem>>, %arg6: memref<1x8x128xf32, #tpu.memory_space<vmem>>, %arg7: memref<1x1xf32, #tpu.memory_space<vmem>>, %arg8: memref<1x1xf32, #tpu.memory_space<vmem>>) attributes {dimension_semantics = [#tpu.dimension_semantics<parallel>, #tpu.dimension_semantics<arbitrary>, #tpu.dimension_semantics<arbitrary>], iteration_bounds = array<i64: 1, 1, 1>, scalar_prefetch = 0 : i64, scratch_operands = 2 : i64, tpu.core_type = #tpu.core_type<tc>, window_params = [{transform_indices = @transform_0, window_bounds = array<i64: 16, 32>}, {transform_indices = @transform_1, window_bounds = array<i64: 16, 32>}, {transform_indices = @transform_2, window_bounds = array<i64: 1, 8, 128>}, {transform_indices = @transform_3, window_bounds = array<i64: 1, 8, 128>}]} {
    %c0_i32 = arith.constant 0 : i32
    %0 = arith.cmpi eq, %arg1, %c0_i32 : i32
    %c0_i32_0 = arith.constant 0 : i32
    %1 = arith.cmpi eq, %arg2, %c0_i32_0 : i32
    %2 = arith.andi %0, %1 : i1
    %3 = arith.extui %2 : i1 to i32
    %c0_i32_1 = arith.constant 0 : i32
    %4 = arith.cmpi ne, %3, %c0_i32_1 : i32
    scf.if %4 {
      %cst_22 = arith.constant 0.000000e+00 : f32
      %49 = vector.broadcast %cst_22 : f32 to vector<1x1xf32>
      %c0_23 = arith.constant 0 : index
      %c0_24 = arith.constant 0 : index
      %50 = vector.load %arg7[%c0_23, %c0_24] : memref<1x1xf32, #tpu.memory_space<vmem>>, vector<1x1xf32>
      tpu.vector_store %arg7[%c0_23, %c0_24], %49 {strides = array<i32>} : memref<1x1xf32, #tpu.memory_space<vmem>>, vector<1x1xf32>,
      %cst_25 = arith.constant 0.000000e+00 : f32
      %51 = vector.broadcast %cst_25 : f32 to vector<1x1xf32>
      %c0_26 = arith.constant 0 : index
      %c0_27 = arith.constant 0 : index
      %52 = vector.load %arg8[%c0_26, %c0_27] : memref<1x1xf32, #tpu.memory_space<vmem>>, vector<1x1xf32>
      tpu.vector_store %arg8[%c0_26, %c0_27], %51 {strides = array<i32>} : memref<1x1xf32, #tpu.memory_space<vmem>>, vector<1x1xf32>,
    } else {
    }
    %c0 = arith.constant 0 : index
    %c0_2 = arith.constant 0 : index
    %5 = vector.load %arg3[%c0, %c0_2] : memref<16x32xf32, #tpu.memory_space<vmem>>, vector<16x32xf32>
    %c0_3 = arith.constant 0 : index
    %c0_4 = arith.constant 0 : index
    %6 = vector.load %arg4[%c0_3, %c0_4] : memref<16x32xf32, #tpu.memory_space<vmem>>, vector<16x32xf32>
    %cst = arith.constant dense<0xFF800000> : vector<16xf32>
    %7 = vector.multi_reduction <maximumf>, %6, %cst [1] : vector<16x32xf32> to vector<16xf32>
    %8 = vector.shape_cast %7 : vector<16xf32> to vector<16x1xf32>
    %9 = vector.broadcast %8 : vector<16x1xf32> to vector<16x32xf32>
    %10 = arith.subf %6, %9 : vector<16x32xf32>
    %11 = math.exp %10 : vector<16x32xf32>
    %cst_5 = arith.constant dense<0.000000e+00> : vector<16xf32>
    %12 = vector.multi_reduction <add>, %11, %cst_5 [1] : vector<16x32xf32> to vector<16xf32>
    %13 = vector.shape_cast %12 : vector<16xf32> to vector<16x1xf32>
    %14 = math.log %13 : vector<16x1xf32>
    %cst_6 = arith.constant dense<0.000000e+00> : vector<16xf32>
    %15 = vector.multi_reduction <add>, %5, %cst_6 [1] : vector<16x32xf32> to vector<16xf32>
    %16 = vector.shape_cast %15 : vector<16xf32> to vector<16x1xf32>
    %17 = vector.broadcast %8 : vector<16x1xf32> to vector<16x32xf32>
    %18 = arith.subf %6, %17 : vector<16x32xf32>
    %19 = arith.mulf %5, %18 : vector<16x32xf32>
    %cst_7 = arith.constant dense<0.000000e+00> : vector<16xf32>
    %20 = vector.multi_reduction <add>, %19, %cst_7 [1] : vector<16x32xf32> to vector<16xf32>
    %21 = vector.shape_cast %20 : vector<16xf32> to vector<16x1xf32>
    %22 = arith.mulf %16, %14 : vector<16x1xf32>
    %23 = arith.subf %22, %21 : vector<16x1xf32>
    %cst_8 = arith.constant 1.000000e-03 : f32
    %24 = vector.broadcast %cst_8 : f32 to vector<16x1xf32>
    %25 = arith.cmpf ogt, %16, %24 : vector<16x1xf32>
    %26 = arith.extui %25 : vector<16x1xi1> to vector<16x1xi32>
    %27 = arith.sitofp %26 : vector<16x1xi32> to vector<16x1xf32>
    %c0_9 = arith.constant 0 : index
    %c0_10 = arith.constant 0 : index
    %28 = vector.load %arg7[%c0_9, %c0_10] : memref<1x1xf32, #tpu.memory_space<vmem>>, vector<1x1xf32>
    %29 = vector.shape_cast %23 : vector<16x1xf32> to vector<1x16x1xf32>
    %cst_11 = arith.constant dense<0.000000e+00> : vector<1xf32>
    %30 = vector.multi_reduction <add>, %29, %cst_11 [1, 2] : vector<1x16x1xf32> to vector<1xf32>
    %31 = vector.shape_cast %30 : vector<1xf32> to vector<1x1x1xf32>
    %32 = vector.extract %31[0, 0, 0] : f32 from vector<1x1x1xf32>
    %33 = vector.broadcast %32 : f32 to vector<1x1xf32>
    %34 = arith.addf %28, %33 : vector<1x1xf32>
    %c0_12 = arith.constant 0 : index
    %c0_13 = arith.constant 0 : index
    %35 = vector.load %arg7[%c0_12, %c0_13] : memref<1x1xf32, #tpu.memory_space<vmem>>, vector<1x1xf32>
    tpu.vector_store %arg7[%c0_12, %c0_13], %34 {strides = array<i32>} : memref<1x1xf32, #tpu.memory_space<vmem>>, vector<1x1xf32>,
    %c0_14 = arith.constant 0 : index
    %c0_15 = arith.constant 0 : index
    %36 = vector.load %arg8[%c0_14, %c0_15] : memref<1x1xf32, #tpu.memory_space<vmem>>, vector<1x1xf32>
    %37 = vector.shape_cast %27 : vector<16x1xf32> to vector<1x16x1xf32>
    %cst_16 = arith.constant dense<0.000000e+00> : vector<1xf32>
    %38 = vector.multi_reduction <add>, %37, %cst_16 [1, 2] : vector<1x16x1xf32> to vector<1xf32>
    %39 = vector.shape_cast %38 : vector<1xf32> to vector<1x1x1xf32>
    %40 = vector.extract %39[0, 0, 0] : f32 from vector<1x1x1xf32>
    %41 = vector.broadcast %40 : f32 to vector<1x1xf32>
    %42 = arith.addf %36, %41 : vector<1x1xf32>
    %c0_17 = arith.constant 0 : index
    %c0_18 = arith.constant 0 : index
    %43 = vector.load %arg8[%c0_17, %c0_18] : memref<1x1xf32, #tpu.memory_space<vmem>>, vector<1x1xf32>
    tpu.vector_store %arg8[%c0_17, %c0_18], %42 {strides = array<i32>} : memref<1x1xf32, #tpu.memory_space<vmem>>, vector<1x1xf32>,
    %c0_i32_19 = arith.constant 0 : i32
    %44 = arith.cmpi eq, %arg1, %c0_i32_19 : i32
    %c0_i32_20 = arith.constant 0 : i32
    %45 = arith.cmpi eq, %arg2, %c0_i32_20 : i32
    %46 = arith.andi %44, %45 : i1
    %47 = arith.extui %46 : i1 to i32
    %c0_i32_21 = arith.constant 0 : i32
    %48 = arith.cmpi ne, %47, %c0_i32_21 : i32
    scf.if %48 {
      %c0_22 = arith.constant 0 : index
      %c0_23 = arith.constant 0 : index
      %49 = vector.load %arg7[%c0_22, %c0_23] : memref<1x1xf32, #tpu.memory_space<vmem>>, vector<1x1xf32>
      %50 = vector.shape_cast %49 : vector<1x1xf32> to vector<1x1x1xf32>
      %51 = vector.broadcast %50 : vector<1x1x1xf32> to vector<1x8x128xf32>
      %c0_24 = arith.constant 0 : index
      %c0_25 = arith.constant 0 : index
      %c0_26 = arith.constant 0 : index
      %52 = vector.load %arg5[%c0_24, %c0_25, %c0_26] : memref<1x8x128xf32, #tpu.memory_space<vmem>>, vector<1x8x128xf32>
      tpu.vector_store %arg5[%c0_24, %c0_25, %c0_26], %51 {strides = array<i32>} : memref<1x8x128xf32, #tpu.memory_space<vmem>>, vector<1x8x128xf32>,
      %c0_27 = arith.constant 0 : index
      %c0_28 = arith.constant 0 : index
      %53 = vector.load %arg8[%c0_27, %c0_28] : memref<1x1xf32, #tpu.memory_space<vmem>>, vector<1x1xf32>
      %54 = vector.shape_cast %53 : vector<1x1xf32> to vector<1x1x1xf32>
      %55 = vector.broadcast %54 : vector<1x1x1xf32> to vector<1x8x128xf32>
      %c0_29 = arith.constant 0 : index
      %c0_30 = arith.constant 0 : index
      %c0_31 = arith.constant 0 : index
      %56 = vector.load %arg6[%c0_29, %c0_30, %c0_31] : memref<1x8x128xf32, #tpu.memory_space<vmem>>, vector<1x8x128xf32>
      tpu.vector_store %arg6[%c0_29, %c0_30, %c0_31], %55 {strides = array<i32>} : memref<1x8x128xf32, #tpu.memory_space<vmem>>, vector<1x8x128xf32>,
    } else {
    }
    return
  }
  func.func @transform_0(%arg0: i32, %arg1: i32, %arg2: i32) -> (i32, i32) {
    %c1_i32 = arith.constant 1 : i32
    %0 = arith.muli %arg0, %c1_i32 : i32
    %1 = arith.addi %0, %arg1 : i32
    %c0_i32 = arith.constant 0 : i32
    return %1, %arg2 : i32, i32
  }
  func.func @transform_1(%arg0: i32, %arg1: i32, %arg2: i32) -> (i32, i32) {
    %c1_i32 = arith.constant 1 : i32
    %0 = arith.muli %arg0, %c1_i32 : i32
    %1 = arith.addi %0, %arg1 : i32
    %c0_i32 = arith.constant 0 : i32
    return %1, %arg2 : i32, i32
  }
  func.func @transform_2(%arg0: i32, %arg1: i32, %arg2: i32) -> (i32, i32, i32) {
    %c0_i32 = arith.constant 0 : i32
    %c0_i32_0 = arith.constant 0 : i32
    %c0_i32_1 = arith.constant 0 : i32
    return %arg0, %c0_i32, %c0_i32_0 : i32, i32, i32
  }
  func.func @transform_3(%arg0: i32, %arg1: i32, %arg2: i32) -> (i32, i32, i32) {
    %c0_i32 = arith.constant 0 : i32
    %c0_i32_0 = arith.constant 0 : i32
    %c0_i32_1 = arith.constant 0 : i32
    return %arg0, %c0_i32, %c0_i32_0 : i32, i32, i32
  }
}

</mosaic_0001>

<llo_original>
// kernel: tpu_custom_call.1
$region0: #{tpu_custom_call.1}
  #allocation0 [shape = 'u32[]', space=smem, size = 0x4, offset = 0x4, fixed_abs, tag = 'smem constant byte address 0x4 - core index']
  #allocation1 [shape = 'u32[144,128]{1,0:T(1,128)}', space=vmem, size = 0x12000, scoped, tag = 'internal scratch']
  #allocation2 [shape = 'f32[1,1]{1,0:T(1,128)}', space=vmem, size = 0x200, scoped, tag = 'scratch operand']
  #allocation3 [shape = 'f32[1,1]{1,0:T(1,128)}', space=vmem, size = 0x200, scoped, tag = 'scratch operand']
  %s0 = inlined_call_operand.hbm [shape: f32[16,32], index: 0, kind: input, shape index: {}]
  %s1 = inlined_call_operand.hbm [shape: f32[16,32], index: 1, kind: input, shape index: {}]
  %s2 = inlined_call_operand.hbm [shape: f32[1,8,128], index: 2, kind: output, shape index: {0}]
  %s3 = inlined_call_operand.hbm [shape: f32[1,8,128], index: 3, kind: output, shape index: {1}]
  %4 = xla_tuple %s2, %s3
  %s5 = sld [smem:[#allocation0]]
  $region42: #{tpu_custom_call.1} parent=0
    _
  %s7 = ssub.s32 1, %s5
  %s8 = scalar_select 0, %s7, %s5
  $region1: #{tpu_custom_call.1} parent=0
    #allocation4 [shape = 'u8[8192]{0}', space=vmem, size = 0x2000, scoped, tag = 'input window, operand 0, single buffered']
    #allocation5 [shape = 's32[1]{0}', space=sflag, size = 0x4, scoped, tag = 'scoped memory for tpu_custom_call.1']
    #allocation6 [shape = 's32[1]{0}', space=sflag, size = 0x4, scoped, tag = 'scoped memory for tpu_custom_call.1']
    #allocation7 [shape = 'u8[8192]{0}', space=vmem, size = 0x2000, scoped, tag = 'input window, operand 1, single buffered']
    #allocation8 [shape = 's32[1]{0}', space=sflag, size = 0x4, scoped, tag = 'scoped memory for tpu_custom_call.1']
    #allocation9 [shape = 'u8[4096]{0}', space=vmem, size = 0x1000, scoped, tag = 'output window, operand 0, single buffered']
    #allocation10 [shape = 'u8[4096]{0}', space=vmem, size = 0x1000, scoped, tag = 'output window, operand 1, single buffered']
    #allocation11 [shape = 's32[1]{0}', space=sflag, size = 0x4, scoped, tag = 'scoped memory for tpu_custom_call.1']
    %9 = vsyncpa [#allocation5], 0
    %10 = vsyncpa [#allocation8], 0
    %11 = vsyncpa [#allocation6], 0
    %12 = vsyncpa [#allocation11], 0
    // Predicated region
    $region2: #{tpu_custom_call.1} parent=1 // pred_check
      _
    $region3: #{tpu_custom_call.1} parent=1 // pred_check_branch
      %14 = sbr.rel (0) target = $region5
    $region4: #{tpu_custom_call.1} parent=1 // pred_region
      %s15 = sadd.s32 0, 0
      %s16 = smul.u32 2, %s15
      %s18 = ssub.s32 256, 256
      %19 = vsyncadd [#allocation5], %s18
      %s20 = smul.addr %s16, 128
      %s21 = scalar_lea.hbm %s0, %s20
      %s22 = sshll.u32 [#allocation4], 4
      %s23 = int_to_ptr.vmem [resolvable:$true] %s22
      %28 = dma.hbm_to_vmem [thread:$0]  %s21, 256, %s23, [#allocation5], 128, 128, 8
    $region5: #{tpu_custom_call.1} parent=1 // pred_fallthru
      _
    // Predicated region
    $region6: #{tpu_custom_call.1} parent=1 // pred_check
      _
    $region7: #{tpu_custom_call.1} parent=1 // pred_check_branch
      %30 = sbr.rel (0) target = $region9
    $region8: #{tpu_custom_call.1} parent=1 // pred_region
      %s31 = sadd.s32 0, 0
      %s32 = smul.u32 2, %s31
      %s34 = ssub.s32 256, 256
      %35 = vsyncadd [#allocation8], %s34
      %s36 = smul.addr %s32, 128
      %s37 = scalar_lea.hbm %s1, %s36
      %s38 = sshll.u32 [#allocation7], 4
      %s39 = int_to_ptr.vmem [resolvable:$true] %s38
      %44 = dma.hbm_to_vmem [thread:$0]  %s37, 256, %s39, [#allocation8], 128, 128, 8
    $region9: #{tpu_custom_call.1} parent=1 // pred_fallthru
      _
    // Predicated region
    $region10: #{tpu_custom_call.1} parent=1 // pred_check
      _
    $region11: #{tpu_custom_call.1} parent=1 // pred_check_branch
      %46 = sbr.rel (0) target = $region13
    $region12: #{tpu_custom_call.1} parent=1 // pred_region
      %47 = dma.done [#allocation5], 256
    $region13: #{tpu_custom_call.1} parent=1 // pred_fallthru
      _
    // Predicated region
    $region14: #{tpu_custom_call.1} parent=1 // pred_check
      _
    $region15: #{tpu_custom_call.1} parent=1 // pred_check_branch
      %49 = sbr.rel (0) target = $region17
    $region16: #{tpu_custom_call.1} parent=1 // pred_region
      %50 = dma.done [#allocation8], 256
    $region17: #{tpu_custom_call.1} parent=1 // pred_fallthru
      _
    %s51 = sadd.s32 0, 0
    %s52 = smul.u32 2, %s51
    %s53 = sadd.s32 0, 0
    %s54 = smul.u32 2, %s53
    %p55 = scmp.eq.s32.totalorder 0, 0
    %p56 = scmp.eq.s32.totalorder 0, 0
    %p57 = pnand %p55, %p56
    %p58 = pneg %p57
    // Predicated region
    $region18: #{tpu_custom_call.1} parent=1 // pred_check
      _
    $region19: #{tpu_custom_call.1} parent=1 // pred_check_branch
      %60 = sbr.rel (%p57) target = $region21
    $region20: #{tpu_custom_call.1} parent=1 // pred_region
      %vm61 = vcmask 0
      %62 = vst.msk [vmem:[#allocation2] sm:$0x1] %vm61, 0.0
      %63 = vst.msk [vmem:[#allocation3] sm:$0x1] %vm61, 0.0
    $region21: #{tpu_custom_call.1} parent=1 // pred_fallthru
      _
    %v64 = vld [vmem:[#allocation4] sm:$0xff]
    %v65 = vld [vmem:[#allocation4 + $0x8] sm:$0xff]
    %v66 = vld [vmem:[#allocation7] sm:$0xff]
    %v67 = vld [vmem:[#allocation7 + $0x8] sm:$0xff]
    %vm68 = vcmask 261120
    %v69 = vsel %vm68, %v66, -inf
    %70 = vmax.xlane.f32.xlu0 %v69
    %v71 = vpop.xlane.xlu0 %70
    %v72 = vsel %vm68, %v67, -inf
    %73 = vmax.xlane.f32.xlu0 %v72
    %v74 = vpop.xlane.xlu0 %73
    %v75 = vsub.f32 %v66, %v71
    %v76 = vsub.f32 %v67, %v74
    %v77 = vmul.f32 %v75, 1.442695
    %v78 = vpow.pop %v77
    %v79 = vmul.f32 %v76, 1.442695
    %v80 = vpow.pop %v79
    %v81 = vsel %vm68, %v78, 0.0
    %82 = vadd.xlane.f32.xlu0 %v81
    %v83 = vpop.xlane.xlu0 %82
    %v84 = vsel %vm68, %v80, 0.0
    %85 = vadd.xlane.f32.xlu0 %v84
    %v86 = vpop.xlane.xlu0 %85
    %v87 = vlog2.pop %v83
    %v88 = vmul.f32 %v87, 0.6931472
    %v89 = vlog2.pop %v86
    %v90 = vmul.f32 %v89, 0.6931472
    %v91 = vsel %vm68, %v64, 0.0
    %92 = vadd.xlane.f32.xlu0 %v91
    %v93 = vpop.xlane.xlu0 %92
    %v94 = vsel %vm68, %v65, 0.0
    %95 = vadd.xlane.f32.xlu0 %v94
    %v96 = vpop.xlane.xlu0 %95
    %v97 = vmul.f32 %v64, %v75
    %v98 = vmul.f32 %v65, %v76
    %v99 = vsel %vm68, %v97, 0.0
    %100 = vadd.xlane.f32.xlu0 %v99
    %v101 = vpop.xlane.xlu0 %100
    %v102 = vsel %vm68, %v98, 0.0
    %103 = vadd.xlane.f32.xlu0 %v102
    %v104 = vpop.xlane.xlu0 %103
    %v105 = vmul.f32 %v93, %v88
    %v106 = vmul.f32 %v96, %v90
    %v107 = vsub.f32 %v105, %v101
    %v108 = vsub.f32 %v106, %v104
    %vm109 = vcmp.gt.f32.partialorder %v93, 0.001
    %vm110 = vcmp.gt.f32.partialorder %v96, 0.001
    %v111 = vsel %vm109, 1, 0
    %v112 = vsel %vm110, 1, 0
    %v113 = vcvt.s32.f32 %v111
    %v114 = vcvt.s32.f32 %v112
    %v115 = vld [vmem:[#allocation2] sm:$0x1]
    %vm116 = vcmask 7168
    %v117 = vsel %vm116, %v107, 0.0
    %v118 = vsel %vm116, %v108, 0.0
    %v119 = vadd.f32 %v117, %v118
    %120 = vadd.xlane.f32.xlu0 %v119
    %v121 = vpop.xlane.xlu0 %120
    %v122 = vrot.slane %v121, 4
    %v123 = vadd.f32 %v121, %v122
    %v124 = vrot.slane %v123, 2
    %v125 = vadd.f32 %v123, %v124
    %v126 = vrot.slane %v125, 1
    %v127 = vadd.f32 %v125, %v126
    %s128 = vtos %v127
    %v129 = vstv %s128
    %v130 = vadd.f32 %v115, %v129
    %vm131 = vcmask 0
    %132 = vst.msk [vmem:[#allocation2] sm:$0x1] %vm131, %v130
    %v133 = vld [vmem:[#allocation3] sm:$0x1]
    %v134 = vsel %vm116, %v113, 0.0
    %v135 = vsel %vm116, %v114, 0.0
    %v136 = vadd.f32 %v134, %v135
    %137 = vadd.xlane.f32.xlu0 %v136
    %v138 = vpop.xlane.xlu0 %137
    %v139 = vrot.slane %v138, 4
    %v140 = vadd.f32 %v138, %v139
    %v141 = vrot.slane %v140, 2
    %v142 = vadd.f32 %v140, %v141
    %v143 = vrot.slane %v142, 1
    %v144 = vadd.f32 %v142, %v143
    %s145 = vtos %v144
    %v146 = vstv %s145
    %v147 = vadd.f32 %v133, %v146
    %148 = vst.msk [vmem:[#allocation3] sm:$0x1] %vm131, %v147
    // Predicated region
    $region22: #{tpu_custom_call.1} parent=1 // pred_check
      _
    $region23: #{tpu_custom_call.1} parent=1 // pred_check_branch
      %150 = sbr.rel (%p57) target = $region25
    $region24: #{tpu_custom_call.1} parent=1 // pred_region
      %v151 = vld [vmem:[#allocation2] sm:$0x1]
      %v153 = vlaneseq
      %v154 = vshrl.u32 %v153, 7
      %v155 = vsub.s32 0, %v154
      %v156 = vrot.slane %v151, %v155
      %157 = vset.pattern.permute.xlu0 0
      %158 = vperm.xlu0 %157, %v156
      %v159 = vpop.permute.xlu0 %158
      %161 = vst [vmem:[#allocation9] sm:$0xff] %v159
      %v162 = vld [vmem:[#allocation3] sm:$0x1]
      %v164 = vlaneseq
      %v165 = vshrl.u32 %v164, 7
      %v166 = vsub.s32 0, %v165
      %v167 = vrot.slane %v162, %v166
      %168 = vset.pattern.permute.xlu0 0
      %169 = vperm.xlu0 %168, %v167
      %v170 = vpop.permute.xlu0 %169
      %172 = vst [vmem:[#allocation10] sm:$0xff] %v170
    $region25: #{tpu_custom_call.1} parent=1 // pred_fallthru
      _
    // Predicated region
    $region26: #{tpu_custom_call.1} parent=1 // pred_check
      _
    $region27: #{tpu_custom_call.1} parent=1 // pred_check_branch
      %174 = sbr.rel (0) target = $region29
    $region28: #{tpu_custom_call.1} parent=1 // pred_region
      %s176 = ssub.s32 128, 128
      %177 = vsyncadd [#allocation6], %s176
      %s179 = sshll.u32 [#allocation9], 4
      %s180 = int_to_ptr.vmem [resolvable:$true] %s179
      %182 = dma.vmem_to_hbm [thread:$0]  %s180, 128, %s2, [#allocation6]
    $region29: #{tpu_custom_call.1} parent=1 // pred_fallthru
      _
    // Predicated region
    $region30: #{tpu_custom_call.1} parent=1 // pred_check
      _
    $region31: #{tpu_custom_call.1} parent=1 // pred_check_branch
      %184 = sbr.rel (0) target = $region33
    $region32: #{tpu_custom_call.1} parent=1 // pred_region
      %s186 = ssub.s32 128, 128
      %187 = vsyncadd [#allocation11], %s186
      %s189 = sshll.u32 [#allocation10], 4
      %s190 = int_to_ptr.vmem [resolvable:$true] %s189
      %192 = dma.vmem_to_hbm [thread:$0]  %s190, 128, %s3, [#allocation11]
    $region33: #{tpu_custom_call.1} parent=1 // pred_fallthru
      _
    // Predicated region
    $region34: #{tpu_custom_call.1} parent=1 // pred_check
      _
    $region35: #{tpu_custom_call.1} parent=1 // pred_check_branch
      %194 = sbr.rel (0) target = $region37
    $region36: #{tpu_custom_call.1} parent=1 // pred_region
      %195 = dma.done [#allocation6], 128
    $region37: #{tpu_custom_call.1} parent=1 // pred_fallthru
      _
    // Predicated region
    $region38: #{tpu_custom_call.1} parent=1 // pred_check
      _
    $region39: #{tpu_custom_call.1} parent=1 // pred_check_branch
      %197 = sbr.rel (0) target = $region41
    $region40: #{tpu_custom_call.1} parent=1 // pred_region
      %198 = dma.done [#allocation11], 128
    $region41: #{tpu_custom_call.1} parent=1 // pred_fallthru
      _
    %199 = vsyncpa [#allocation5], 1
    %200 = vsyncpa [#allocation8], 1
    %201 = vsyncpa [#allocation6], 1
    %202 = vsyncpa [#allocation11], 1

</llo_original>
